<compile_context>
chip_gen: v6e
topology: v6e:2x2x1
jax: 0.10.0
libtpu: 0.0.40
codegen_flags: <defaults>
</compile_context>

<pallas_src>
import jax
import jax.numpy as jnp
from jax.experimental import pallas as pl
from jax.experimental.pallas import tpu as pltpu

_LANE = 128
_SUBLANE = 8


def _round_up(x, m):
    return (x + m - 1) // m * m


def _policy_kernel(x_ref, w1_ref, b1_ref, w2_ref, b2_ref, wm_ref, bm_ref,
                   mean_ref):
    # x_ref:  [obs, tb]       bf16   (batch on lanes)
    # w*_ref: transposed, zero-padded bf16 weights; b*_ref: [*, 1] f32 column biases.
    x = x_ref[...]                                                    # bf16
    h1 = jnp.tanh(
        jnp.dot(w1_ref[...], x, preferred_element_type=jnp.float32)
        + b1_ref[...])                                                # [Hp, tb] f32
    h2 = jnp.tanh(
        jnp.dot(w2_ref[...], h1.astype(jnp.bfloat16),
                preferred_element_type=jnp.float32)
        + b2_ref[...])                                                # [Hp, tb] f32
    mean_t = (jnp.dot(wm_ref[...], h2.astype(jnp.bfloat16),
                      preferred_element_type=jnp.float32)
              + bm_ref[...])                                          # [Ap, tb] f32
    mean_ref[...] = mean_t.astype(mean_ref.dtype)


def policy_forward(state, packed, *, block_b=2048):
    """Fused policy forward pass. Returns (mean, std), each [B, act_dim]."""
    B, obs = state.shape
    act_dim = packed["act_dim"]
    hid_pad = packed["w1_t"].shape[0]
    act_pad = packed["w_mean_t"].shape[0]

    # Balanced ragged tiling: split B into n_steps roughly-equal lane-aligned tiles.
    n_steps = pl.cdiv(B, block_b)
    if n_steps == 1 and B >= 2 * _LANE:
        n_steps = 2  # v7x: keep >=2 grid steps so both TensorCores get work.
    tb = _round_up(pl.cdiv(B, n_steps), _LANE)
    b_pad = n_steps * tb

    # One-time layout transform on the wrapper side: bf16 cast + transpose + zero-pad.
    x_t = jnp.pad(state.astype(jnp.bfloat16).T, ((0, 0), (0, b_pad - B)))

    mean_t = pl.pallas_call(
        _policy_kernel,
        out_shape=jax.ShapeDtypeStruct((act_pad, b_pad), jnp.float32),
        grid=(n_steps,),
        in_specs=[
            pl.BlockSpec((obs, tb), lambda i: (0, i)),            # x^T tile
            pl.BlockSpec((hid_pad, obs), lambda i: (0, 0)),       # W1^T (resident)
            pl.BlockSpec((hid_pad, 1), lambda i: (0, 0)),         # b1 column
            pl.BlockSpec((hid_pad, hid_pad), lambda i: (0, 0)),   # W2^T
            pl.BlockSpec((hid_pad, 1), lambda i: (0, 0)),         # b2 column
            pl.BlockSpec((act_pad, hid_pad), lambda i: (0, 0)),   # Wm^T
            pl.BlockSpec((act_pad, 1), lambda i: (0, 0)),         # b_mean column
        ],
        out_specs=pl.BlockSpec((act_pad, tb), lambda i: (0, i)),
        compiler_params=pltpu.CompilerParams(
            dimension_semantics=("parallel",),
            vmem_limit_bytes=32 * 1024 * 1024),
    )(x_t,
      packed["w1_t"], packed["b1_t"],
      packed["w2_t"], packed["b2_t"],
      packed["w_mean_t"], packed["b_mean_t"])

    mean = mean_t[:act_dim, :B].T
    # std is batch-invariant: compute once, broadcast outside the kernel.
    std = jnp.broadcast_to(jnp.exp(packed["log_std"]), mean.shape)
    return mean, std


def init_params(key, obs_dim, hidden, act_dim):
    """Logical (unpadded, f32) parameters of the MLP policy."""
    ks = jax.random.split(key, 3)
    s1 = 1.0 / jnp.sqrt(obs_dim)
    s2 = 1.0 / jnp.sqrt(hidden)
    return {
        "w1": jax.random.normal(ks[0], (obs_dim, hidden), jnp.float32) * s1,
        "b1": jnp.zeros((hidden,), jnp.float32),
        "w2": jax.random.normal(ks[1], (hidden, hidden), jnp.float32) * s2,
        "b2": jnp.zeros((hidden,), jnp.float32),
        "w_mean": jax.random.normal(ks[2], (hidden, act_dim), jnp.float32) * s2,
        "b_mean": jnp.zeros((act_dim,), jnp.float32),
        "log_std": jnp.full((act_dim,), -0.5, jnp.float32),
    }


def pack_params(p):
    """One-time layout transform: transpose, zero-pad (hid->128 lanes on the contraction
    side, act->8 sublanes), bf16 weights, column-vector f32 biases."""
    obs_dim, hidden = p["w1"].shape
    act_dim = p["w_mean"].shape[1]
    hid_pad = _round_up(hidden, _LANE)
    act_pad = _round_up(act_dim, _SUBLANE)

    def pad_t(w, rows, cols):
        wt = w.T
        return jnp.pad(wt, ((0, rows - wt.shape[0]), (0, cols - wt.shape[1])))

    def pad_col(b, rows):
        return jnp.pad(b, (0, rows - b.shape[0]))[:, None]

    packed = {
        "w1_t": pad_t(p["w1"], hid_pad, obs_dim).astype(jnp.bfloat16),
        "b1_t": pad_col(p["b1"], hid_pad),
        "w2_t": pad_t(p["w2"], hid_pad, hid_pad).astype(jnp.bfloat16),
        "b2_t": pad_col(p["b2"], hid_pad),
        "w_mean_t": pad_t(p["w_mean"], act_pad, hid_pad).astype(jnp.bfloat16),
        "b_mean_t": pad_col(p["b_mean"], act_pad),
        "log_std": p["log_std"][None, :],
        "act_dim": act_dim,
        "obs_dim": obs_dim,
    }
    # Invariant (flagged in review): padded hidden rows of W1^T/W2^T and b1/b2 must be
    # exactly zero so tanh(0)=0 keeps the hidden-lane padding inert.
    if hid_pad > hidden:
        assert not bool(jnp.any(packed["w1_t"][hidden:] != 0))
        assert not bool(jnp.any(packed["w2_t"][hidden:] != 0))
        assert not bool(jnp.any(packed["b1_t"][hidden:] != 0))
        assert not bool(jnp.any(packed["b2_t"][hidden:] != 0))
    return packed


def policy_forward_ref(state, p):
    """Pure-JAX reference mirroring the kernel's bf16/f32 precision."""
    bf = jnp.bfloat16
    h1 = jnp.tanh(jnp.dot(state.astype(bf), p["w1"].astype(bf),
                          preferred_element_type=jnp.float32) + p["b1"])
    h2 = jnp.tanh(jnp.dot(h1.astype(bf), p["w2"].astype(bf),
                          preferred_element_type=jnp.float32) + p["b2"])
    mean = jnp.dot(h2.astype(bf), p["w_mean"].astype(bf),
                   preferred_element_type=jnp.float32) + p["b_mean"]
    std = jnp.broadcast_to(jnp.exp(p["log_std"]), mean.shape)
    return mean, std


if __name__ == "__main__":
    OBS, HID, ACT = 16, 32, 4
    key = jax.random.PRNGKey(0)
    k_state, k_params, k_big = jax.random.split(key, 3)

    params = init_params(k_params, OBS, HID, ACT)
    packed = pack_params(params)

    # Small batch (single grid step).
    state = jax.random.normal(k_state, (8, OBS), jnp.float32)
    mean, std = policy_forward(state, packed)
    jax.block_until_ready((mean, std))
    mean_r, std_r = policy_forward_ref(state, params)
    assert mean.shape == (8, ACT) and std.shape == (8, ACT)
    assert jnp.allclose(mean, mean_r, atol=2e-3, rtol=2e-3)
    assert jnp.allclose(std, std_r, atol=1e-6, rtol=1e-6)

    # Larger ragged batch: exercises balanced ragged tiling, the >=2-step "parallel"
    # batch grid (v7x megacore sharding), and the transposed lane-dense layout.
    big_state = jax.random.normal(k_big, (1064, OBS), jnp.float32)
    big_mean, big_std = policy_forward(big_state, packed)
    jax.block_until_ready((big_mean, big_std))
    big_mean_r, big_std_r = policy_forward_ref(big_state, params)
    assert big_mean.shape == (1064, ACT) and big_std.shape == (1064, ACT)
    assert jnp.allclose(big_mean, big_mean_r, atol=2e-3, rtol=2e-3)
    assert jnp.allclose(big_std, big_std_r, atol=1e-6, rtol=1e-6)

    # Multi-step grid (more than 2 steps) to exercise the batch pipeline.
    many_mean, many_std = policy_forward(big_state, packed, block_b=256)
    jax.block_until_ready((many_mean, many_std))
    assert jnp.allclose(many_mean, big_mean_r, atol=2e-3, rtol=2e-3)

    print("KERNEL_OK")
</pallas_src>

<mosaic_0001>
module attributes {stable_mosaic.version = 11 : i64} {
  func.func @_policy_kernel(%arg0: i32, %arg1: memref<16x128xbf16, #tpu.memory_space<vmem>>, %arg2: memref<128x16xbf16, #tpu.memory_space<vmem>>, %arg3: memref<128x1xf32, #tpu.memory_space<vmem>>, %arg4: memref<128x128xbf16, #tpu.memory_space<vmem>>, %arg5: memref<128x1xf32, #tpu.memory_space<vmem>>, %arg6: memref<8x128xbf16, #tpu.memory_space<vmem>>, %arg7: memref<8x1xf32, #tpu.memory_space<vmem>>, %arg8: memref<8x128xf32, #tpu.memory_space<vmem>>) attributes {dimension_semantics = [#tpu.dimension_semantics<parallel>], iteration_bounds = array<i64: 1>, scalar_prefetch = 0 : i64, scratch_operands = 0 : i64, tpu.core_type = #tpu.core_type<tc>, window_params = [{transform_indices = @transform_0, window_bounds = array<i64: 16, 128>}, {pipeline_mode = #tpu.pipeline_mode<synchronous>, transform_indices = @transform_1, window_bounds = array<i64: 128, 16>}, {pipeline_mode = #tpu.pipeline_mode<synchronous>, transform_indices = @transform_2, window_bounds = array<i64: 128, 1>}, {pipeline_mode = #tpu.pipeline_mode<synchronous>, transform_indices = @transform_3, window_bounds = array<i64: 128, 128>}, {pipeline_mode = #tpu.pipeline_mode<synchronous>, transform_indices = @transform_4, window_bounds = array<i64: 128, 1>}, {pipeline_mode = #tpu.pipeline_mode<synchronous>, transform_indices = @transform_5, window_bounds = array<i64: 8, 128>}, {pipeline_mode = #tpu.pipeline_mode<synchronous>, transform_indices = @transform_6, window_bounds = array<i64: 8, 1>}, {transform_indices = @transform_7, window_bounds = array<i64: 8, 128>}]} {
    %c0 = arith.constant 0 : index
    %c0_0 = arith.constant 0 : index
    %0 = vector.load %arg1[%c0, %c0_0] : memref<16x128xbf16, #tpu.memory_space<vmem>>, vector<16x128xbf16>
    %c0_1 = arith.constant 0 : index
    %c0_2 = arith.constant 0 : index
    %1 = vector.load %arg2[%c0_1, %c0_2] : memref<128x16xbf16, #tpu.memory_space<vmem>>, vector<128x16xbf16>
    %cst = arith.constant dense<0.000000e+00> : vector<128x128xf32>
    %2 = tpu.matmul %1, %0, %cst {dimension_numbers = #tpu.dot_dimension_numbers<[1], [0], [0], [1], [0, 0, 1, 1], [], []>} : vector<128x16xbf16>, vector<16x128xbf16>, vector<128x128xf32> -> vector<128x128xf32>
    %c0_3 = arith.constant 0 : index
    %c0_4 = arith.constant 0 : index
    %3 = vector.load %arg3[%c0_3, %c0_4] : memref<128x1xf32, #tpu.memory_space<vmem>>, vector<128x1xf32>
    %4 = vector.broadcast %3 : vector<128x1xf32> to vector<128x128xf32>
    %5 = arith.addf %2, %4 : vector<128x128xf32>
    %6 = math.tanh %5 : vector<128x128xf32>
    %c0_5 = arith.constant 0 : index
    %c0_6 = arith.constant 0 : index
    %7 = vector.load %arg4[%c0_5, %c0_6] : memref<128x128xbf16, #tpu.memory_space<vmem>>, vector<128x128xbf16>
    %8 = arith.truncf %6 : vector<128x128xf32> to vector<128x128xbf16>
    %cst_7 = arith.constant dense<0.000000e+00> : vector<128x128xf32>
    %9 = tpu.matmul %7, %8, %cst_7 {dimension_numbers = #tpu.dot_dimension_numbers<[1], [0], [0], [1], [0, 0, 1, 1], [], []>} : vector<128x128xbf16>, vector<128x128xbf16>, vector<128x128xf32> -> vector<128x128xf32>
    %c0_8 = arith.constant 0 : index
    %c0_9 = arith.constant 0 : index
    %10 = vector.load %arg5[%c0_8, %c0_9] : memref<128x1xf32, #tpu.memory_space<vmem>>, vector<128x1xf32>
    %11 = vector.broadcast %10 : vector<128x1xf32> to vector<128x128xf32>
    %12 = arith.addf %9, %11 : vector<128x128xf32>
    %13 = math.tanh %12 : vector<128x128xf32>
    %c0_10 = arith.constant 0 : index
    %c0_11 = arith.constant 0 : index
    %14 = vector.load %arg6[%c0_10, %c0_11] : memref<8x128xbf16, #tpu.memory_space<vmem>>, vector<8x128xbf16>
    %15 = arith.truncf %13 : vector<128x128xf32> to vector<128x128xbf16>
    %cst_12 = arith.constant dense<0.000000e+00> : vector<8x128xf32>
    %16 = tpu.matmul %14, %15, %cst_12 {dimension_numbers = #tpu.dot_dimension_numbers<[1], [0], [0], [1], [0, 0, 1, 1], [], []>} : vector<8x128xbf16>, vector<128x128xbf16>, vector<8x128xf32> -> vector<8x128xf32>
    %c0_13 = arith.constant 0 : index
    %c0_14 = arith.constant 0 : index
    %17 = vector.load %arg7[%c0_13, %c0_14] : memref<8x1xf32, #tpu.memory_space<vmem>>, vector<8x1xf32>
    %18 = vector.broadcast %17 : vector<8x1xf32> to vector<8x128xf32>
    %19 = arith.addf %16, %18 : vector<8x128xf32>
    %c0_15 = arith.constant 0 : index
    %c0_16 = arith.constant 0 : index
    %20 = vector.load %arg8[%c0_15, %c0_16] : memref<8x128xf32, #tpu.memory_space<vmem>>, vector<8x128xf32>
    tpu.vector_store %arg8[%c0_15, %c0_16], %19 {strides = array<i32>} : memref<8x128xf32, #tpu.memory_space<vmem>>, vector<8x128xf32>,
    return
  }
  func.func @transform_0(%arg0: i32) -> (i32, i32) {
    %c0_i32 = arith.constant 0 : i32
    %c0_i32_0 = arith.constant 0 : i32
    return %c0_i32, %arg0 : i32, i32
  }
  func.func @transform_1(%arg0: i32) -> (i32, i32) {
    %c0_i32 = arith.constant 0 : i32
    %c0_i32_0 = arith.constant 0 : i32
    %c0_i32_1 = arith.constant 0 : i32
    return %c0_i32, %c0_i32_0 : i32, i32
  }
  func.func @transform_2(%arg0: i32) -> (i32, i32) {
    %c0_i32 = arith.constant 0 : i32
    %c0_i32_0 = arith.constant 0 : i32
    %c0_i32_1 = arith.constant 0 : i32
    return %c0_i32, %c0_i32_0 : i32, i32
  }
  func.func @transform_3(%arg0: i32) -> (i32, i32) {
    %c0_i32 = arith.constant 0 : i32
    %c0_i32_0 = arith.constant 0 : i32
    %c0_i32_1 = arith.constant 0 : i32
    return %c0_i32, %c0_i32_0 : i32, i32
  }
  func.func @transform_4(%arg0: i32) -> (i32, i32) {
    %c0_i32 = arith.constant 0 : i32
    %c0_i32_0 = arith.constant 0 : i32
    %c0_i32_1 = arith.constant 0 : i32
    return %c0_i32, %c0_i32_0 : i32, i32
  }
  func.func @transform_5(%arg0: i32) -> (i32, i32) {
    %c0_i32 = arith.constant 0 : i32
    %c0_i32_0 = arith.constant 0 : i32
    %c0_i32_1 = arith.constant 0 : i32
    return %c0_i32, %c0_i32_0 : i32, i32
  }
  func.func @transform_6(%arg0: i32) -> (i32, i32) {
    %c0_i32 = arith.constant 0 : i32
    %c0_i32_0 = arith.constant 0 : i32
    %c0_i32_1 = arith.constant 0 : i32
    return %c0_i32, %c0_i32_0 : i32, i32
  }
  func.func @transform_7(%arg0: i32) -> (i32, i32) {
    %c0_i32 = arith.constant 0 : i32
    %c0_i32_0 = arith.constant 0 : i32
    return %c0_i32, %arg0 : i32, i32
  }
}

</mosaic_0001>

<llo_original>
// kernel: tpu_custom_call.1
$region0: #{tpu_custom_call.1}
  #allocation0 [shape = 'u32[]', space=smem, size = 0x4, offset = 0x4, fixed_abs, tag = 'smem constant byte address 0x4 - core index']
  #allocation1 [shape = 'u32[144,128]{1,0:T(1,128)}', space=vmem, size = 0x12000, scoped, tag = 'internal scratch']
  %s0 = inlined_call_operand.vmem [shape: bf16[16,128], index: 0, kind: input, shape index: {}]
  %s1 = inlined_call_operand.vmem [shape: bf16[128,16], index: 1, kind: input, shape index: {}]
  %s2 = inlined_call_operand.vmem [shape: f32[128,1], index: 2, kind: input, shape index: {}]
  %s3 = inlined_call_operand.vmem [shape: bf16[128,128], index: 3, kind: input, shape index: {}]
  %s4 = inlined_call_operand.vmem [shape: f32[128,1], index: 4, kind: input, shape index: {}]
  %s5 = inlined_call_operand.vmem [shape: bf16[8,128], index: 5, kind: input, shape index: {}]
  %s6 = inlined_call_operand.vmem [shape: f32[8,1], index: 6, kind: input, shape index: {}]
  %s7 = inlined_call_operand.hbm [shape: f32[8,128], index: 7, kind: output, shape index: {}]
  %s8 = sld [smem:[#allocation0]]
  $region38: #{tpu_custom_call.1} parent=0
    _
  %s10 = ssub.s32 1, %s8
  %s11 = scalar_select 0, %s10, %s8
  $region1: #{tpu_custom_call.1} parent=0
    #allocation2 [shape = 'u8[4096]{0}', space=vmem, size = 0x1000, scoped, tag = 'output window, operand 0, single buffered']
    #allocation3 [shape = 's32[1]{0}', space=sflag, size = 0x4, scoped, tag = 'scoped memory for tpu_custom_call.1']
    %12 = vsyncpa [#allocation3], 0
    // Predicated region
    $region2: #{tpu_custom_call.1} parent=1 // pred_check
      _
    $region3: #{tpu_custom_call.1} parent=1 // pred_check_branch
      %14 = sbr.rel (0) target = $region5
    $region4: #{tpu_custom_call.1} parent=1 // pred_region
      _
    $region5: #{tpu_custom_call.1} parent=1 // pred_fallthru
      _
    // Predicated region
    $region6: #{tpu_custom_call.1} parent=1 // pred_check
      _
    $region7: #{tpu_custom_call.1} parent=1 // pred_check_branch
      %16 = sbr.rel (0) target = $region9
    $region8: #{tpu_custom_call.1} parent=1 // pred_region
      _
    $region9: #{tpu_custom_call.1} parent=1 // pred_fallthru
      _
    // Predicated region
    $region10: #{tpu_custom_call.1} parent=1 // pred_check
      _
    $region11: #{tpu_custom_call.1} parent=1 // pred_check_branch
      %18 = sbr.rel (0) target = $region13
    $region12: #{tpu_custom_call.1} parent=1 // pred_region
      _
    $region13: #{tpu_custom_call.1} parent=1 // pred_fallthru
      _
    // Predicated region
    $region14: #{tpu_custom_call.1} parent=1 // pred_check
      _
    $region15: #{tpu_custom_call.1} parent=1 // pred_check_branch
      %20 = sbr.rel (0) target = $region17
    $region16: #{tpu_custom_call.1} parent=1 // pred_region
      _
    $region17: #{tpu_custom_call.1} parent=1 // pred_fallthru
      _
    // Predicated region
    $region18: #{tpu_custom_call.1} parent=1 // pred_check
      _
    $region19: #{tpu_custom_call.1} parent=1 // pred_check_branch
      %22 = sbr.rel (0) target = $region21
    $region20: #{tpu_custom_call.1} parent=1 // pred_region
      _
    $region21: #{tpu_custom_call.1} parent=1 // pred_fallthru
      _
    // Predicated region
    $region22: #{tpu_custom_call.1} parent=1 // pred_check
      _
    $region23: #{tpu_custom_call.1} parent=1 // pred_check_branch
      %24 = sbr.rel (0) target = $region25
    $region24: #{tpu_custom_call.1} parent=1 // pred_region
      _
    $region25: #{tpu_custom_call.1} parent=1 // pred_fallthru
      _
    // Predicated region
    $region26: #{tpu_custom_call.1} parent=1 // pred_check
      _
    $region27: #{tpu_custom_call.1} parent=1 // pred_check_branch
      %26 = sbr.rel (0) target = $region29
    $region28: #{tpu_custom_call.1} parent=1 // pred_region
      _
    $region29: #{tpu_custom_call.1} parent=1 // pred_fallthru
      _
    %v28 = vld [vmem:[%s0] sm:$0xf]
    %v29 = vld [vmem:[%s0 + $0x4] sm:$0xf]
    %v30 = vld [vmem:[%s1] sm:$0xf]
    %v31 = vld [vmem:[%s1 + $0x4] sm:$0xf]
    %v32 = vld [vmem:[%s1 + $0x8] sm:$0xf]
    %v33 = vld [vmem:[%s1 + $0xc] sm:$0xf]
    %v34 = vld [vmem:[%s1 + $0x10] sm:$0xf]
    %v35 = vld [vmem:[%s1 + $0x14] sm:$0xf]
    %v36 = vld [vmem:[%s1 + $0x18] sm:$0xf]
    %v37 = vld [vmem:[%s1 + $0x1c] sm:$0xf]
    %v38 = vld [vmem:[%s1 + $0x20] sm:$0xf]
    %v39 = vld [vmem:[%s1 + $0x24] sm:$0xf]
    %v40 = vld [vmem:[%s1 + $0x28] sm:$0xf]
    %v41 = vld [vmem:[%s1 + $0x2c] sm:$0xf]
    %v42 = vld [vmem:[%s1 + $0x30] sm:$0xf]
    %v43 = vld [vmem:[%s1 + $0x34] sm:$0xf]
    %v44 = vld [vmem:[%s1 + $0x38] sm:$0xf]
    %v45 = vld [vmem:[%s1 + $0x3c] sm:$0xf]
    %v46 = vld [vmem:[%s2] sm:$0xff]
    %v47 = vld [vmem:[%s2 + $0x8] sm:$0xff]
    %v48 = vld [vmem:[%s2 + $0x10] sm:$0xff]
    %v49 = vld [vmem:[%s2 + $0x18] sm:$0xff]
    %v50 = vld [vmem:[%s2 + $0x20] sm:$0xff]
    %v51 = vld [vmem:[%s2 + $0x28] sm:$0xff]
    %v52 = vld [vmem:[%s2 + $0x30] sm:$0xff]
    %v53 = vld [vmem:[%s2 + $0x38] sm:$0xff]
    %v54 = vld [vmem:[%s2 + $0x40] sm:$0xff]
    %v55 = vld [vmem:[%s2 + $0x48] sm:$0xff]
    %v56 = vld [vmem:[%s2 + $0x50] sm:$0xff]
    %v57 = vld [vmem:[%s2 + $0x58] sm:$0xff]
    %v58 = vld [vmem:[%s2 + $0x60] sm:$0xff]
    %v59 = vld [vmem:[%s2 + $0x68] sm:$0xff]
    %v60 = vld [vmem:[%s2 + $0x70] sm:$0xff]
    %v61 = vld [vmem:[%s2 + $0x78] sm:$0xff]
    %63 = vset.pattern.permute.xlu0 0
    %64 = vperm.xlu0 %63, %v46
    %v65 = vpop.permute.xlu0 %64
    %68 = vset.pattern.permute.xlu0 0
    %69 = vperm.xlu0 %68, %v47
    %v70 = vpop.permute.xlu0 %69
    %73 = vset.pattern.permute.xlu0 0
    %74 = vperm.xlu0 %73, %v48
    %v75 = vpop.permute.xlu0 %74
    %78 = vset.pattern.permute.xlu0 0
    %79 = vperm.xlu0 %78, %v49
    %v80 = vpop.permute.xlu0 %79
    %83 = vset.pattern.permute.xlu0 0
    %84 = vperm.xlu0 %83, %v50
    %v85 = vpop.permute.xlu0 %84
    %88 = vset.pattern.permute.xlu0 0
    %89 = vperm.xlu0 %88, %v51
    %v90 = vpop.permute.xlu0 %89
    %93 = vset.pattern.permute.xlu0 0
    %94 = vperm.xlu0 %93, %v52
    %v95 = vpop.permute.xlu0 %94
    %98 = vset.pattern.permute.xlu0 0
    %99 = vperm.xlu0 %98, %v53
    %v100 = vpop.permute.xlu0 %99
    %103 = vset.pattern.permute.xlu0 0
    %104 = vperm.xlu0 %103, %v54
    %v105 = vpop.permute.xlu0 %104
    %108 = vset.pattern.permute.xlu0 0
    %109 = vperm.xlu0 %108, %v55
    %v110 = vpop.permute.xlu0 %109
    %113 = vset.pattern.permute.xlu0 0
    %114 = vperm.xlu0 %113, %v56
    %v115 = vpop.permute.xlu0 %114
    %118 = vset.pattern.permute.xlu0 0
    %119 = vperm.xlu0 %118, %v57
    %v120 = vpop.permute.xlu0 %119
    %123 = vset.pattern.permute.xlu0 0
    %124 = vperm.xlu0 %123, %v58
    %v125 = vpop.permute.xlu0 %124
    %128 = vset.pattern.permute.xlu0 0
    %129 = vperm.xlu0 %128, %v59
    %v130 = vpop.permute.xlu0 %129
    %133 = vset.pattern.permute.xlu0 0
    %134 = vperm.xlu0 %133, %v60
    %v135 = vpop.permute.xlu0 %134
    %138 = vset.pattern.permute.xlu0 0
    %139 = vperm.xlu0 %138, %v61
    %v140 = vpop.permute.xlu0 %139
    %v158 = vunpack.c.l.b16 %v30
    %v159 = vunpack.c.l.b16 %v31
    %v160 = vunpack.c.l.b16 %v32
    %v161 = vunpack.c.l.b16 %v33
    %v162 = vunpack.c.l.b16 %v34
    %v163 = vunpack.c.l.b16 %v35
    %v164 = vunpack.c.l.b16 %v36
    %v165 = vunpack.c.l.b16 %v37
    %v166 = vunpack.c.l.b16 %v38
    %v167 = vunpack.c.l.b16 %v39
    %v168 = vunpack.c.l.b16 %v40
    %v169 = vunpack.c.l.b16 %v41
    %v170 = vunpack.c.l.b16 %v42
    %v171 = vunpack.c.l.b16 %v43
    %v172 = vunpack.c.l.b16 %v44
    %v173 = vunpack.c.l.b16 %v45
    %v174 = vpack.c.b16 %v159, %v158
    %v175 = vpack.c.b16 %v161, %v160
    %v176 = vpack.c.b16 %v163, %v162
    %v177 = vpack.c.b16 %v165, %v164
    %v178 = vpack.c.b16 %v167, %v166
    %v179 = vpack.c.b16 %v169, %v168
    %v180 = vpack.c.b16 %v171, %v170
    %v181 = vpack.c.b16 %v173, %v172
    %v184 = vunpack.c.l.b16 %v28
    %v185 = vunpack.c.l.b16 %v29
    %v186 = vpack.c.b16 %v185, %v184
    %vm188 = vcmask 130048
    %v190 = vsel %vm188, %v174, 0
    %v193 = vsel %vm188, %v175, 0
    %v196 = vsel %vm188, %v176, 0
    %v199 = vsel %vm188, %v177, 0
    %v202 = vsel %vm188, %v178, 0
    %v205 = vsel %vm188, %v179, 0
    %v208 = vsel %vm188, %v180, 0
    %v211 = vsel %vm188, %v181, 0
    %213 = vmatprep.subr.bf16.mxu0 0
    %214 = vmatpush1.bf16.msra.mxu0 0
    %215 = vmatprep.subr.bf16.mxu0 0
    %216 = vmatpush1.bf16.msra.mxu0 0
    %217 = vmatprep.subr.bf16.mxu0 0
    %218 = vmatpush1.bf16.msra.mxu0 0
    %219 = vmatprep.subr.bf16.mxu0 0
    %220 = vmatpush1.bf16.msra.mxu0 0
    %221 = vmatprep.subr.bf16.mxu0 0
    %222 = vmatpush1.bf16.msra.mxu0 0
    %223 = vmatprep.subr.bf16.mxu0 0
    %224 = vmatpush1.bf16.msra.mxu0 0
    %225 = vmatprep.subr.bf16.mxu0 0
    %226 = vmatpush1.bf16.msra.mxu0 0
    %227 = vmatprep.subr.bf16.mxu0 0
    %228 = vmatpush1.bf16.msra.mxu0 %v186
    %229 = vmatprep.subr.bf16.mxu0 0
    %230 = vmatpush2.bf16.msra.mxu0 0
    %231 = vmatprep.subr.bf16.mxu0 0
    %232 = vmatpush2.bf16.msra.mxu0 0
    %233 = vmatprep.subr.bf16.mxu0 0
    %234 = vmatpush2.bf16.msra.mxu0 0
    %235 = vmatprep.subr.bf16.mxu0 0
    %236 = vmatpush2.bf16.msra.mxu0 0
    %237 = vmatprep.subr.bf16.mxu0 0
    %238 = vmatpush2.bf16.msra.mxu0 0
    %239 = vmatprep.subr.bf16.mxu0 0
    %240 = vmatpush2.bf16.msra.mxu0 0
    %241 = vmatprep.subr.bf16.mxu0 0
    %242 = vmatpush2.bf16.msra.mxu0 0
    %243 = vmatprep.subr.bf16.mxu0 0
    %244 = vmatpush2.bf16.msra.mxu0 0
    %245 = vmatprep.mubr.bf16.mxu0 0
    %246 = vmatmul.mubr.bf16.gmra.mxu0 %v190
    %v247 = vpop.f32.mrf.mxu0
    %v248 = vadd.f32 %v65, %v247
    %v249 = vpop.f32.mrf.mxu0
    %v250 = vpop.f32.mrf.mxu0
    %v251 = vadd.f32 %v70, %v250
    %v252 = vpop.f32.mrf.mxu0
    %253 = vmatprep.mubr.bf16.mxu0 0
    %254 = vmatmul.mubr.bf16.gmra.mxu0 %v193
    %v255 = vpop.f32.mrf.mxu0
    %v256 = vadd.f32 %v75, %v255
    %v257 = vpop.f32.mrf.mxu0
    %v258 = vpop.f32.mrf.mxu0
    %v259 = vadd.f32 %v80, %v258
    %v260 = vpop.f32.mrf.mxu0
    %261 = vmatprep.mubr.bf16.mxu0 0
    %262 = vmatmul.mubr.bf16.gmra.mxu0 %v196
    %v263 = vpop.f32.mrf.mxu0
    %v264 = vadd.f32 %v85, %v263
    %v265 = vpop.f32.mrf.mxu0
    %v266 = vpop.f32.mrf.mxu0
    %v267 = vadd.f32 %v90, %v266
    %v268 = vpop.f32.mrf.mxu0
    %269 = vmatprep.mubr.bf16.mxu0 0
    %270 = vmatmul.mubr.bf16.gmra.mxu0 %v199
    %v271 = vpop.f32.mrf.mxu0
    %v272 = vadd.f32 %v95, %v271
    %v273 = vpop.f32.mrf.mxu0
    %v274 = vpop.f32.mrf.mxu0
    %v275 = vadd.f32 %v100, %v274
    %v276 = vpop.f32.mrf.mxu0
    %277 = vmatprep.mubr.bf16.mxu0 0
    %278 = vmatmul.mubr.bf16.gmra.mxu0 %v202
    %v279 = vpop.f32.mrf.mxu0
    %v280 = vadd.f32 %v105, %v279
    %v281 = vpop.f32.mrf.mxu0
    %v282 = vpop.f32.mrf.mxu0
    %v283 = vadd.f32 %v110, %v282
    %v284 = vpop.f32.mrf.mxu0
    %285 = vmatprep.mubr.bf16.mxu0 0
    %286 = vmatmul.mubr.bf16.gmra.mxu0 %v205
    %v287 = vpop.f32.mrf.mxu0
    %v288 = vadd.f32 %v115, %v287
    %v289 = vpop.f32.mrf.mxu0
    %v290 = vpop.f32.mrf.mxu0
    %v291 = vadd.f32 %v120, %v290
    %v292 = vpop.f32.mrf.mxu0
    %293 = vmatprep.mubr.bf16.mxu0 0
    %294 = vmatmul.mubr.bf16.gmra.mxu0 %v208
    %v295 = vpop.f32.mrf.mxu0
    %v296 = vadd.f32 %v125, %v295
    %v297 = vpop.f32.mrf.mxu0
    %v298 = vpop.f32.mrf.mxu0
    %v299 = vadd.f32 %v130, %v298
    %v300 = vpop.f32.mrf.mxu0
    %301 = vmatprep.mubr.bf16.mxu0 0
    %302 = vmatmul.mubr.bf16.gmra.mxu0 %v211
    %v303 = vpop.f32.mrf.mxu0
    %v304 = vadd.f32 %v135, %v303
    %v305 = vpop.f32.mrf.mxu0
    %v306 = vpop.f32.mrf.mxu0
    %v307 = vadd.f32 %v140, %v306
    %v308 = vpop.f32.mrf.mxu0
    %309 = vdwg.mxu0
    %v310 = vtanh.pop %v248
    %v311 = vtanh.pop %v251
    %v312 = vtanh.pop %v256
    %v313 = vtanh.pop %v259
    %v314 = vtanh.pop %v264
    %v315 = vtanh.pop %v267
    %v316 = vtanh.pop %v272
    %v317 = vtanh.pop %v275
    %v318 = vtanh.pop %v280
    %v319 = vtanh.pop %v283
    %v320 = vtanh.pop %v288
    %v321 = vtanh.pop %v291
    %v322 = vtanh.pop %v296
    %v323 = vtanh.pop %v299
    %v324 = vtanh.pop %v304
    %v325 = vtanh.pop %v307
    %v326 = vld [vmem:[%s3] sm:$0xf]
    %v327 = vld [vmem:[%s3 + $0x4] sm:$0xf]
    %v328 = vld [vmem:[%s3 + $0x8] sm:$0xf]
    %v329 = vld [vmem:[%s3 + $0xc] sm:$0xf]
    %v330 = vld [vmem:[%s3 + $0x10] sm:$0xf]
    %v331 = vld [vmem:[%s3 + $0x14] sm:$0xf]
    %v332 = vld [vmem:[%s3 + $0x18] sm:$0xf]
    %v333 = vld [vmem:[%s3 + $0x1c] sm:$0xf]
    %v334 = vld [vmem:[%s3 + $0x20] sm:$0xf]
    %v335 = vld [vmem:[%s3 + $0x24] sm:$0xf]
    %v336 = vld [vmem:[%s3 + $0x28] sm:$0xf]
    %v337 = vld [vmem:[%s3 + $0x2c] sm:$0xf]
    %v338 = vld [vmem:[%s3 + $0x30] sm:$0xf]
    %v339 = vld [vmem:[%s3 + $0x34] sm:$0xf]
    %v340 = vld [vmem:[%s3 + $0x38] sm:$0xf]
    %v341 = vld [vmem:[%s3 + $0x3c] sm:$0xf]
    %v342 = vpack.c.bf16 %v311, %v310
    %v343 = vpack.c.bf16 %v313, %v312
    %v344 = vpack.c.bf16 %v315, %v314
    %v345 = vpack.c.bf16 %v317, %v316
    %v346 = vpack.c.bf16 %v319, %v318
    %v347 = vpack.c.bf16 %v321, %v320
    %v348 = vpack.c.bf16 %v323, %v322
    %v349 = vpack.c.bf16 %v325, %v324
    %v350 = vld [vmem:[%s4] sm:$0xff]
    %v351 = vld [vmem:[%s4 + $0x8] sm:$0xff]
    %v352 = vld [vmem:[%s4 + $0x10] sm:$0xff]
    %v353 = vld [vmem:[%s4 + $0x18] sm:$0xff]
    %v354 = vld [vmem:[%s4 + $0x20] sm:$0xff]
    %v355 = vld [vmem:[%s4 + $0x28] sm:$0xff]
    %v356 = vld [vmem:[%s4 + $0x30] sm:$0xff]
    %v357 = vld [vmem:[%s4 + $0x38] sm:$0xff]
    %v358 = vld [vmem:[%s4 + $0x40] sm:$0xff]
    %v359 = vld [vmem:[%s4 + $0x48] sm:$0xff]
    %v360 = vld [vmem:[%s4 + $0x50] sm:$0xff]
    %v361 = vld [vmem:[%s4 + $0x58] sm:$0xff]
    %v362 = vld [vmem:[%s4 + $0x60] sm:$0xff]
    %v363 = vld [vmem:[%s4 + $0x68] sm:$0xff]
    %v364 = vld [vmem:[%s4 + $0x70] sm:$0xff]
    %v365 = vld [vmem:[%s4 + $0x78] sm:$0xff]
    %367 = vset.pattern.permute.xlu0 0
    %368 = vperm.xlu0 %367, %v350
    %v369 = vpop.permute.xlu0 %368
    %372 = vset.pattern.permute.xlu0 0
    %373 = vperm.xlu0 %372, %v351
    %v374 = vpop.permute.xlu0 %373
    %377 = vset.pattern.permute.xlu0 0
    %378 = vperm.xlu0 %377, %v352
    %v379 = vpop.permute.xlu0 %378
    %382 = vset.pattern.permute.xlu0 0
    %383 = vperm.xlu0 %382, %v353
    %v384 = vpop.permute.xlu0 %383
    %387 = vset.pattern.permute.xlu0 0
    %388 = vperm.xlu0 %387, %v354
    %v389 = vpop.permute.xlu0 %388
    %392 = vset.pattern.permute.xlu0 0
    %393 = vperm.xlu0 %392, %v355
    %v394 = vpop.permute.xlu0 %393
    %397 = vset.pattern.permute.xlu0 0
    %398 = vperm.xlu0 %397, %v356
    %v399 = vpop.permute.xlu0 %398
    %402 = vset.pattern.permute.xlu0 0
    %403 = vperm.xlu0 %402, %v357
    %v404 = vpop.permute.xlu0 %403
    %407 = vset.pattern.permute.xlu0 0
    %408 = vperm.xlu0 %407, %v358
    %v409 = vpop.permute.xlu0 %408
    %412 = vset.pattern.permute.xlu0 0
    %413 = vperm.xlu0 %412, %v359
    %v414 = vpop.permute.xlu0 %413
    %417 = vset.pattern.permute.xlu0 0
    %418 = vperm.xlu0 %417, %v360
    %v419 = vpop.permute.xlu0 %418
    %422 = vset.pattern.permute.xlu0 0
    %423 = vperm.xlu0 %422, %v361
    %v424 = vpop.permute.xlu0 %423
    %427 = vset.pattern.permute.xlu0 0
    %428 = vperm.xlu0 %427, %v362
    %v429 = vpop.permute.xlu0 %428
    %432 = vset.pattern.permute.xlu0 0
    %433 = vperm.xlu0 %432, %v363
    %v434 = vpop.permute.xlu0 %433
    %437 = vset.pattern.permute.xlu0 0
    %438 = vperm.xlu0 %437, %v364
    %v439 = vpop.permute.xlu0 %438
    %442 = vset.pattern.permute.xlu0 0
    %443 = vperm.xlu0 %442, %v365
    %v444 = vpop.permute.xlu0 %443
    %v462 = vunpack.c.l.b16 %v326
    %v463 = vunpack.c.l.b16 %v327
    %v464 = vunpack.c.l.b16 %v328
    %v465 = vunpack.c.l.b16 %v329
    %v466 = vunpack.c.l.b16 %v330
    %v467 = vunpack.c.l.b16 %v331
    %v468 = vunpack.c.l.b16 %v332
    %v469 = vunpack.c.l.b16 %v333
    %v470 = vunpack.c.l.b16 %v334
    %v471 = vunpack.c.l.b16 %v335
    %v472 = vunpack.c.l.b16 %v336
    %v473 = vunpack.c.l.b16 %v337
    %v474 = vunpack.c.l.b16 %v338
    %v475 = vunpack.c.l.b16 %v339
    %v476 = vunpack.c.l.b16 %v340
    %v477 = vunpack.c.l.b16 %v341
    %v478 = vpack.c.b16 %v463, %v462
    %v479 = vpack.c.b16 %v465, %v464
    %v480 = vpack.c.b16 %v467, %v466
    %v481 = vpack.c.b16 %v469, %v468
    %v482 = vpack.c.b16 %v471, %v470
    %v483 = vpack.c.b16 %v473, %v472
    %v484 = vpack.c.b16 %v475, %v474
    %v485 = vpack.c.b16 %v477, %v476
    %494 = vmatprep.subr.bf16.mxu0 0
    %495 = vmatpush1.bf16.msra.mxu0 %v349
    %496 = vmatprep.subr.bf16.mxu0 0
    %497 = vmatpush1.bf16.msra.mxu0 %v348
    %498 = vmatprep.subr.bf16.mxu0 0
    %499 = vmatpush1.bf16.msra.mxu0 %v347
    %500 = vmatprep.subr.bf16.mxu0 0
    %501 = vmatpush1.bf16.msra.mxu0 %v346
    %502 = vmatprep.subr.bf16.mxu0 0
    %503 = vmatpush1.bf16.msra.mxu0 %v345
    %504 = vmatprep.subr.bf16.mxu0 0
    %505 = vmatpush1.bf16.msra.mxu0 %v344
    %506 = vmatprep.subr.bf16.mxu0 0
    %507 = vmatpush1.bf16.msra.mxu0 %v343
    %508 = vmatprep.subr.bf16.mxu0 0
    %509 = vmatpush1.bf16.msra.mxu0 %v342
    %510 = vmatprep.subr.bf16.mxu0 0
    %511 = vmatpush2.bf16.msra.mxu0 0
    %512 = vmatprep.subr.bf16.mxu0 0
    %513 = vmatpush2.bf16.msra.mxu0 0
    %514 = vmatprep.subr.bf16.mxu0 0
    %515 = vmatpush2.bf16.msra.mxu0 0
    %516 = vmatprep.subr.bf16.mxu0 0
    %517 = vmatpush2.bf16.msra.mxu0 0
    %518 = vmatprep.subr.bf16.mxu0 0
    %519 = vmatpush2.bf16.msra.mxu0 0
    %520 = vmatprep.subr.bf16.mxu0 0
    %521 = vmatpush2.bf16.msra.mxu0 0
    %522 = vmatprep.subr.bf16.mxu0 0
    %523 = vmatpush2.bf16.msra.mxu0 0
    %524 = vmatprep.subr.bf16.mxu0 0
    %525 = vmatpush2.bf16.msra.mxu0 0
    %526 = vmatprep.mubr.bf16.mxu0 0
    %527 = vmatmul.mubr.bf16.gmra.mxu0 %v478
    %v528 = vpop.f32.mrf.mxu0
    %v529 = vadd.f32 %v369, %v528
    %v530 = vpop.f32.mrf.mxu0
    %v531 = vpop.f32.mrf.mxu0
    %v532 = vadd.f32 %v374, %v531
    %v533 = vpop.f32.mrf.mxu0
    %534 = vmatprep.mubr.bf16.mxu0 0
    %535 = vmatmul.mubr.bf16.gmra.mxu0 %v479
    %v536 = vpop.f32.mrf.mxu0
    %v537 = vadd.f32 %v379, %v536
    %v538 = vpop.f32.mrf.mxu0
    %v539 = vpop.f32.mrf.mxu0
    %v540 = vadd.f32 %v384, %v539
    %v541 = vpop.f32.mrf.mxu0
    %542 = vmatprep.mubr.bf16.mxu0 0
    %543 = vmatmul.mubr.bf16.gmra.mxu0 %v480
    %v544 = vpop.f32.mrf.mxu0
    %v545 = vadd.f32 %v389, %v544
    %v546 = vpop.f32.mrf.mxu0
    %v547 = vpop.f32.mrf.mxu0
    %v548 = vadd.f32 %v394, %v547
    %v549 = vpop.f32.mrf.mxu0
    %550 = vmatprep.mubr.bf16.mxu0 0
    %551 = vmatmul.mubr.bf16.gmra.mxu0 %v481
    %v552 = vpop.f32.mrf.mxu0
    %v553 = vadd.f32 %v399, %v552
    %v554 = vpop.f32.mrf.mxu0
    %v555 = vpop.f32.mrf.mxu0
    %v556 = vadd.f32 %v404, %v555
    %v557 = vpop.f32.mrf.mxu0
    %558 = vmatprep.mubr.bf16.mxu0 0
    %559 = vmatmul.mubr.bf16.gmra.mxu0 %v482
    %v560 = vpop.f32.mrf.mxu0
    %v561 = vadd.f32 %v409, %v560
    %v562 = vpop.f32.mrf.mxu0
    %v563 = vpop.f32.mrf.mxu0
    %v564 = vadd.f32 %v414, %v563
    %v565 = vpop.f32.mrf.mxu0
    %566 = vmatprep.mubr.bf16.mxu0 0
    %567 = vmatmul.mubr.bf16.gmra.mxu0 %v483
    %v568 = vpop.f32.mrf.mxu0
    %v569 = vadd.f32 %v419, %v568
    %v570 = vpop.f32.mrf.mxu0
    %v571 = vpop.f32.mrf.mxu0
    %v572 = vadd.f32 %v424, %v571
    %v573 = vpop.f32.mrf.mxu0
    %574 = vmatprep.mubr.bf16.mxu0 0
    %575 = vmatmul.mubr.bf16.gmra.mxu0 %v484
    %v576 = vpop.f32.mrf.mxu0
    %v577 = vadd.f32 %v429, %v576
    %v578 = vpop.f32.mrf.mxu0
    %v579 = vpop.f32.mrf.mxu0
    %v580 = vadd.f32 %v434, %v579
    %v581 = vpop.f32.mrf.mxu0
    %582 = vmatprep.mubr.bf16.mxu0 0
    %583 = vmatmul.mubr.bf16.gmra.mxu0 %v485
    %v584 = vpop.f32.mrf.mxu0
    %v585 = vadd.f32 %v439, %v584
    %v586 = vpop.f32.mrf.mxu0
    %v587 = vpop.f32.mrf.mxu0
    %v588 = vadd.f32 %v444, %v587
    %v589 = vpop.f32.mrf.mxu0
    %590 = vdwg.mxu0
    %v591 = vtanh.pop %v529
    %v592 = vtanh.pop %v532
    %v593 = vtanh.pop %v537
    %v594 = vtanh.pop %v540
    %v595 = vtanh.pop %v545
    %v596 = vtanh.pop %v548
    %v597 = vtanh.pop %v553
    %v598 = vtanh.pop %v556
    %v599 = vtanh.pop %v561
    %v600 = vtanh.pop %v564
    %v601 = vtanh.pop %v569
    %v602 = vtanh.pop %v572
    %v603 = vtanh.pop %v577
    %v604 = vtanh.pop %v580
    %v605 = vtanh.pop %v585
    %v606 = vtanh.pop %v588
    %v607 = vld [vmem:[%s5] sm:$0xf]
    %v608 = vpack.c.bf16 %v592, %v591
    %v609 = vpack.c.bf16 %v594, %v593
    %v610 = vpack.c.bf16 %v596, %v595
    %v611 = vpack.c.bf16 %v598, %v597
    %v612 = vpack.c.bf16 %v600, %v599
    %v613 = vpack.c.bf16 %v602, %v601
    %v614 = vpack.c.bf16 %v604, %v603
    %v615 = vpack.c.bf16 %v606, %v605
    %v616 = vld [vmem:[%s6] sm:$0xff]
    %618 = vset.pattern.permute.xlu0 0
    %619 = vperm.xlu0 %618, %v616
    %v620 = vpop.permute.xlu0 %619
    %622 = vmatprep.subr.bf16.mxu0 0
    %623 = vmatpush1.bf16.msra.mxu0 %v615
    %624 = vmatprep.subr.bf16.mxu0 0
    %625 = vmatpush1.bf16.msra.mxu0 %v614
    %626 = vmatprep.subr.bf16.mxu0 0
    %627 = vmatpush1.bf16.msra.mxu0 %v613
    %628 = vmatprep.subr.bf16.mxu0 0
    %629 = vmatpush1.bf16.msra.mxu0 %v612
    %630 = vmatprep.subr.bf16.mxu0 0
    %631 = vmatpush1.bf16.msra.mxu0 %v611
    %632 = vmatprep.subr.bf16.mxu0 0
    %633 = vmatpush1.bf16.msra.mxu0 %v610
    %634 = vmatprep.subr.bf16.mxu0 0
    %635 = vmatpush1.bf16.msra.mxu0 %v609
    %636 = vmatprep.subr.bf16.mxu0 0
    %637 = vmatpush1.bf16.msra.mxu0 %v608
    %638 = vmatprep.subr.bf16.mxu0 0
    %639 = vmatpush2.bf16.msra.mxu0 0
    %640 = vmatprep.subr.bf16.mxu0 0
    %641 = vmatpush2.bf16.msra.mxu0 0
    %642 = vmatprep.subr.bf16.mxu0 0
    %643 = vmatpush2.bf16.msra.mxu0 0
    %644 = vmatprep.subr.bf16.mxu0 0
    %645 = vmatpush2.bf16.msra.mxu0 0
    %646 = vmatprep.subr.bf16.mxu0 0
    %647 = vmatpush2.bf16.msra.mxu0 0
    %648 = vmatprep.subr.bf16.mxu0 0
    %649 = vmatpush2.bf16.msra.mxu0 0
    %650 = vmatprep.subr.bf16.mxu0 0
    %651 = vmatpush2.bf16.msra.mxu0 0
    %652 = vmatprep.subr.bf16.mxu0 0
    %653 = vmatpush2.bf16.msra.mxu0 0
    %654 = vmatprep.mubr.bf16.mxu0 0
    %655 = vmatmul.mubr.bf16.gmra.mxu0 %v607
    %v656 = vpop.f32.mrf.mxu0
    %v657 = vadd.f32 %v620, %v656
    %v658 = vpop.f32.mrf.mxu0
    %v659 = vpop.f32.mrf.mxu0
    %v660 = vpop.f32.mrf.mxu0
    %661 = vdwg.mxu0
    %662 = vst [vmem:[#allocation2] sm:$0xff] %v657
    // Predicated region
    $region30: #{tpu_custom_call.1} parent=1 // pred_check
      _
    $region31: #{tpu_custom_call.1} parent=1 // pred_check_branch
      %664 = sbr.rel (0) target = $region33
    $region32: #{tpu_custom_call.1} parent=1 // pred_region
      %s666 = ssub.s32 128, 128
      %667 = vsyncadd [#allocation3], %s666
      %s669 = sshll.u32 [#allocation2], 4
      %s670 = int_to_ptr.vmem [resolvable:$true] %s669
      %672 = dma.vmem_to_hbm [thread:$0]  %s670, 128, %s7, [#allocation3]
    $region33: #{tpu_custom_call.1} parent=1 // pred_fallthru
      _
    // Predicated region
    $region34: #{tpu_custom_call.1} parent=1 // pred_check
      _
    $region35: #{tpu_custom_call.1} parent=1 // pred_check_branch
      %674 = sbr.rel (0) target = $region37
    $region36: #{tpu_custom_call.1} parent=1 // pred_region
      %675 = dma.done [#allocation3], 128
    $region37: #{tpu_custom_call.1} parent=1 // pred_fallthru
      _
    %676 = vsyncpa [#allocation3], 1

</llo_original>
